<compile_context>
chip_gen: v5e
topology: v5e:2x2
jax: 0.10.0
libtpu: 0.0.40
codegen_flags: <defaults>
</compile_context>

<pallas_src>
import functools

import jax
import jax.numpy as jnp
from jax.experimental import pallas as pl
from jax.experimental.pallas import tpu as pltpu


def se_kernel(x_ref, w1t_ref, w2t_ref, w3t_ref, o_ref, *, channels_last, inv_hw):
    """One grid step: squeeze + excitation MLP + scale for a batch block.

    channels_last=False: x_ref / o_ref are (B_blk, C, HW)  (HW on lanes).
    channels_last=True : x_ref / o_ref are (B_blk, HW, C)  (C on lanes).
    Weights, pre-transposed to (in, out): w1t (C, Cr), w2t (Cr, Cr), w3t (Cr, C).
    """
    # --- Squeeze: global average pool. f32 accumulation only inside the
    # reduction; no full f32 copy of the block stays live across the MLP.
    reduce_axis = 1 if channels_last else 2
    y = jnp.sum(x_ref[...].astype(jnp.float32), axis=reduce_axis) * inv_hw  # (B_blk, C)

    # --- Excitation MLP (bias-free): ReLU, ReLU, Sigmoid.  Batched over the
    # B_blk rows packed into this block so the MXU sees M = B_blk, not 1.
    w1t = w1t_ref[...].astype(jnp.float32)
    w2t = w2t_ref[...].astype(jnp.float32)
    w3t = w3t_ref[...].astype(jnp.float32)
    h1 = jnp.maximum(jnp.dot(y, w1t, preferred_element_type=jnp.float32), 0.0)   # (B_blk, Cr)
    h2 = jnp.maximum(jnp.dot(h1, w2t, preferred_element_type=jnp.float32), 0.0)  # (B_blk, Cr)
    s = jax.nn.sigmoid(jnp.dot(h2, w3t, preferred_element_type=jnp.float32))     # (B_blk, C)

    # --- Scale: multiply straight from the input ref in native dtype
    # (bf16 VALU on v6e/v7x; halves store-side vreg pressure for bf16 blocks).
    s = s.astype(o_ref.dtype)
    if channels_last:
        o_ref[...] = x_ref[...] * s[:, None, :]      # gate broadcast over sublanes
    else:
        o_ref[...] = x_ref[...] * s[:, :, None]      # gate broadcast over lanes


def _pick_batch_block(batch, per_elem_bytes):
    """Largest divisor of `batch` giving blocks <= ~4 MiB while keeping at
    least 2 grid steps (so v7x megacore can split the batch across 2 TCs)."""
    target_bytes = 4 << 20
    max_by_bytes = max(1, target_bytes // max(per_elem_bytes, 1))
    max_by_grid = max(1, batch // 2)
    cap = int(max(1, min(max_by_bytes, max_by_grid, batch)))
    for bb in range(cap, 0, -1):
        if batch % bb == 0:
            return bb
    return 1


def _vmem_limit_bytes(block_bytes, weight_bytes):
    """VMEM budget: double-buffered input + output blocks + weights + slack,
    clamped to the chip's physical VMEM (64 MiB/TC v7x, 128 MiB v5e/v6e)."""
    try:
        capacity = int(pltpu.get_tpu_info().vmem_capacity_bytes)
    except Exception:  # be conservative if the query is unavailable
        capacity = 64 << 20
    needed = 4 * block_bytes + 2 * weight_bytes + (4 << 20)
    limit = min(max(needed, 32 << 20), capacity - (8 << 20))
    return int(max(limit, 16 << 20))


def se_layer(x_nchw, w1, w2, w3, *, channels_last=None):
    """SELayer forward. x_nchw: (B, C, H, W); w1: (Cr, C), w2: (Cr, Cr),
    w3: (C, Cr) in PyTorch nn.Linear (out, in) layout."""
    B, C, H, W = x_nchw.shape
    HW = H * W
    Cr = w1.shape[0]
    itemsize = jnp.dtype(x_nchw.dtype).itemsize

    # Lane-dense layout choice: keep a multiple of 128 on the last (lane) axis.
    if channels_last is None:
        channels_last = (HW % 128 != 0) and (C % 128 == 0)

    x_flat = x_nchw.reshape(B, C, HW)
    if channels_last:
        # NOTE: this transpose costs an extra HBM pass on NCHW inputs; in a
        # channels-last (NHWC) network feed the (B, HW, C) activation directly.
        x_in = jnp.transpose(x_flat, (0, 2, 1))          # (B, HW, C)
        x_block_shape = None                             # filled below
    else:
        x_in = x_flat                                     # (B, C, HW)

    # Pre-transpose weights to (in, out) so the kernel does plain y @ W.
    w1t, w2t, w3t = w1.T, w2.T, w3.T                      # (C,Cr), (Cr,Cr), (Cr,C)

    per_elem_bytes = C * HW * itemsize
    b_blk = _pick_batch_block(B, per_elem_bytes)
    block_bytes = b_blk * per_elem_bytes
    weight_bytes = (w1t.size + w2t.size + w3t.size) * jnp.dtype(w1t.dtype).itemsize
    # TODO(synk): if a single batch element no longer fits v7x's 64 MiB VMEM
    # (e.g. C=256, HW=112^2, f32), restructure into a two-phase reduce+scale grid.
    vmem_limit = _vmem_limit_bytes(block_bytes, weight_bytes)

    x_block_shape = (b_blk, HW, C) if channels_last else (b_blk, C, HW)

    kernel = functools.partial(
        se_kernel, channels_last=channels_last, inv_hw=1.0 / float(HW))

    out = pl.pallas_call(
        kernel,
        out_shape=jax.ShapeDtypeStruct(x_in.shape, x_in.dtype),
        grid_spec=pltpu.PrefetchScalarGridSpec(
            num_scalar_prefetch=0,
            grid=(B // b_blk,),
            in_specs=[
                pl.BlockSpec(x_block_shape, lambda b: (b, 0, 0)),
                # Grid-invariant tiny weights; default buffering is negligible
                # (no re-DMA happens for constant index maps anyway).
                pl.BlockSpec((C, Cr), lambda b: (0, 0)),
                pl.BlockSpec((Cr, Cr), lambda b: (0, 0)),
                pl.BlockSpec((Cr, C), lambda b: (0, 0)),
            ],
            out_specs=pl.BlockSpec(x_block_shape, lambda b: (b, 0, 0)),
        ),
        compiler_params=pltpu.CompilerParams(
            dimension_semantics=("parallel",),   # batch axis feeds v7x megacore
            vmem_limit_bytes=vmem_limit,
        ),
    )(x_in, w1t, w2t, w3t)

    if channels_last:
        out = jnp.transpose(out, (0, 2, 1))
    return out.reshape(B, C, H, W)


def se_layer_ref(x, w1, w2, w3):
    """Pure-JAX reference mirroring the PyTorch forward."""
    y = jnp.mean(x, axis=(2, 3))                       # (B, C)
    y = jnp.maximum(y @ w1.T, 0.0)
    y = jnp.maximum(y @ w2.T, 0.0)
    y = jax.nn.sigmoid(y @ w3.T)                       # (B, C)
    return x * y[:, :, None, None]


if __name__ == "__main__":
    key = jax.random.PRNGKey(0)

    def run_case(case_idx, B, C, H, W, reduction):
        Cr = max(1, C // reduction)
        kx, k1, k2, k3 = jax.random.split(jax.random.fold_in(key, case_idx), 4)
        x = jax.random.normal(kx, (B, C, H, W), dtype=jnp.float32)
        # PyTorch nn.Linear stores weights as (out, in); bias-free per the module.
        w1 = jax.random.normal(k1, (Cr, C), dtype=jnp.float32) * 0.1
        w2 = jax.random.normal(k2, (Cr, Cr), dtype=jnp.float32) * 0.1
        w3 = jax.random.normal(k3, (C, Cr), dtype=jnp.float32) * 0.1

        out = jax.block_until_ready(se_layer(x, w1, w2, w3))
        ref = se_layer_ref(x, w1, w2, w3)
        assert out.shape == (B, C, H, W)
        assert jnp.allclose(out, ref, atol=1e-5, rtol=1e-5), (
            f"mismatch vs JAX reference (case {case_idx})")

    # Channels-first path: HW = 256 is a multiple of 128 (lane-dense as-is).
    run_case(0, B=2, C=32, H=16, W=16, reduction=16)
    # Channels-last path: HW = 49 is not a multiple of 128 but C = 128 is.
    run_case(1, B=2, C=128, H=7, W=7, reduction=16)
    print("KERNEL_OK")
</pallas_src>

<mosaic_0001>
module attributes {stable_mosaic.version = 11 : i64} {
  func.func @se_kernel(%arg0: i32, %arg1: memref<1x32x256xf32, #tpu.memory_space<vmem>>, %arg2: memref<32x2xf32, #tpu.memory_space<vmem>>, %arg3: memref<2x2xf32, #tpu.memory_space<vmem>>, %arg4: memref<2x32xf32, #tpu.memory_space<vmem>>, %arg5: memref<1x32x256xf32, #tpu.memory_space<vmem>>) attributes {dimension_semantics = [#tpu.dimension_semantics<parallel>], iteration_bounds = array<i64: 2>, scalar_prefetch = 0 : i64, scratch_operands = 0 : i64, tpu.core_type = #tpu.core_type<tc>, window_params = [{transform_indices = @transform_0, window_bounds = array<i64: 1, 32, 256>}, {pipeline_mode = #tpu.pipeline_mode<synchronous>, transform_indices = @transform_1, window_bounds = array<i64: 32, 2>}, {pipeline_mode = #tpu.pipeline_mode<synchronous>, transform_indices = @transform_2, window_bounds = array<i64: 2, 2>}, {pipeline_mode = #tpu.pipeline_mode<synchronous>, transform_indices = @transform_3, window_bounds = array<i64: 2, 32>}, {transform_indices = @transform_4, window_bounds = array<i64: 1, 32, 256>}]} {
    %c0 = arith.constant 0 : index
    %c0_0 = arith.constant 0 : index
    %c0_1 = arith.constant 0 : index
    %0 = vector.load %arg1[%c0, %c0_0, %c0_1] : memref<1x32x256xf32, #tpu.memory_space<vmem>>, vector<1x32x256xf32>
    %cst = arith.constant dense<0.000000e+00> : vector<1x32xf32>
    %1 = vector.multi_reduction <add>, %0, %cst [2] : vector<1x32x256xf32> to vector<1x32xf32>
    %cst_2 = arith.constant 3.906250e-03 : f32
    %2 = vector.broadcast %cst_2 : f32 to vector<1x32xf32>
    %3 = arith.mulf %1, %2 : vector<1x32xf32>
    %c0_3 = arith.constant 0 : index
    %c0_4 = arith.constant 0 : index
    %4 = vector.load %arg2[%c0_3, %c0_4] : memref<32x2xf32, #tpu.memory_space<vmem>>, vector<32x2xf32>
    %c0_5 = arith.constant 0 : index
    %c0_6 = arith.constant 0 : index
    %5 = vector.load %arg3[%c0_5, %c0_6] : memref<2x2xf32, #tpu.memory_space<vmem>>, vector<2x2xf32>
    %c0_7 = arith.constant 0 : index
    %c0_8 = arith.constant 0 : index
    %6 = vector.load %arg4[%c0_7, %c0_8] : memref<2x32xf32, #tpu.memory_space<vmem>>, vector<2x32xf32>
    %cst_9 = arith.constant dense<0.000000e+00> : vector<1x2xf32>
    %7 = tpu.matmul %3, %4, %cst_9 {dimension_numbers = #tpu.dot_dimension_numbers<[1], [0], [0], [1], [0, 0, 1, 1], [], []>} : vector<1x32xf32>, vector<32x2xf32>, vector<1x2xf32> -> vector<1x2xf32>
    %cst_10 = arith.constant 0.000000e+00 : f32
    %8 = vector.broadcast %cst_10 : f32 to vector<1x2xf32>
    %9 = arith.maximumf %7, %8 : vector<1x2xf32>
    %cst_11 = arith.constant dense<0.000000e+00> : vector<1x2xf32>
    %10 = tpu.matmul %9, %5, %cst_11 {dimension_numbers = #tpu.dot_dimension_numbers<[1], [0], [0], [1], [0, 0, 1, 1], [], []>} : vector<1x2xf32>, vector<2x2xf32>, vector<1x2xf32> -> vector<1x2xf32>
    %cst_12 = arith.constant 0.000000e+00 : f32
    %11 = vector.broadcast %cst_12 : f32 to vector<1x2xf32>
    %12 = arith.maximumf %10, %11 : vector<1x2xf32>
    %cst_13 = arith.constant dense<0.000000e+00> : vector<1x32xf32>
    %13 = tpu.matmul %12, %6, %cst_13 {dimension_numbers = #tpu.dot_dimension_numbers<[1], [0], [0], [1], [0, 0, 1, 1], [], []>} : vector<1x2xf32>, vector<2x32xf32>, vector<1x32xf32> -> vector<1x32xf32>
    %14 = arith.negf %13 : vector<1x32xf32>
    %15 = math.exp %14 : vector<1x32xf32>
    %cst_14 = arith.constant 1.000000e+00 : f32
    %16 = vector.broadcast %cst_14 : f32 to vector<1x32xf32>
    %17 = arith.addf %16, %15 : vector<1x32xf32>
    %18 = arith.divf %16, %17 : vector<1x32xf32>
    %c0_15 = arith.constant 0 : index
    %c0_16 = arith.constant 0 : index
    %c0_17 = arith.constant 0 : index
    %19 = vector.load %arg1[%c0_15, %c0_16, %c0_17] : memref<1x32x256xf32, #tpu.memory_space<vmem>>, vector<1x32x256xf32>
    %20 = vector.shape_cast %18 : vector<1x32xf32> to vector<1x32x1xf32>
    %21 = vector.broadcast %20 : vector<1x32x1xf32> to vector<1x32x256xf32>
    %22 = arith.mulf %19, %21 : vector<1x32x256xf32>
    %c0_18 = arith.constant 0 : index
    %c0_19 = arith.constant 0 : index
    %c0_20 = arith.constant 0 : index
    %23 = vector.load %arg5[%c0_18, %c0_19, %c0_20] : memref<1x32x256xf32, #tpu.memory_space<vmem>>, vector<1x32x256xf32>
    tpu.vector_store %arg5[%c0_18, %c0_19, %c0_20], %22 {strides = array<i32>} : memref<1x32x256xf32, #tpu.memory_space<vmem>>, vector<1x32x256xf32>,
    return
  }
  func.func @transform_0(%arg0: i32) -> (i32, i32, i32) {
    %c0_i32 = arith.constant 0 : i32
    %c0_i32_0 = arith.constant 0 : i32
    %c0_i32_1 = arith.constant 0 : i32
    return %arg0, %c0_i32, %c0_i32_0 : i32, i32, i32
  }
  func.func @transform_1(%arg0: i32) -> (i32, i32) {
    %c0_i32 = arith.constant 0 : i32
    %c0_i32_0 = arith.constant 0 : i32
    %c0_i32_1 = arith.constant 0 : i32
    return %c0_i32, %c0_i32_0 : i32, i32
  }
  func.func @transform_2(%arg0: i32) -> (i32, i32) {
    %c0_i32 = arith.constant 0 : i32
    %c0_i32_0 = arith.constant 0 : i32
    %c0_i32_1 = arith.constant 0 : i32
    return %c0_i32, %c0_i32_0 : i32, i32
  }
  func.func @transform_3(%arg0: i32) -> (i32, i32) {
    %c0_i32 = arith.constant 0 : i32
    %c0_i32_0 = arith.constant 0 : i32
    %c0_i32_1 = arith.constant 0 : i32
    return %c0_i32, %c0_i32_0 : i32, i32
  }
  func.func @transform_4(%arg0: i32) -> (i32, i32, i32) {
    %c0_i32 = arith.constant 0 : i32
    %c0_i32_0 = arith.constant 0 : i32
    %c0_i32_1 = arith.constant 0 : i32
    return %arg0, %c0_i32, %c0_i32_0 : i32, i32, i32
  }
}

</mosaic_0001>

<llo_original>
// kernel: tpu_custom_call.1
$region0: #{tpu_custom_call.1}
  #allocation0 [shape = 'u32[]', space=smem, size = 0x4, offset = 0x4, fixed_abs, tag = 'smem constant byte address 0x4 - core index']
  #allocation1 [shape = 'u32[72,128]{1,0:T(1,128)}', space=vmem, size = 0x9000, scoped, tag = 'internal scratch']
  %s0 = inlined_call_operand.hbm [shape: f32[2,32,256], index: 0, kind: input, shape index: {}]
  %s1 = inlined_call_operand.vmem [shape: f32[32,2], index: 1, kind: input, shape index: {}]
  %s2 = inlined_call_operand.vmem [shape: f32[2,2], index: 2, kind: input, shape index: {}]
  %s3 = inlined_call_operand.vmem [shape: f32[2,32], index: 3, kind: input, shape index: {}]
  %s4 = inlined_call_operand.hbm [shape: f32[2,32,256], index: 4, kind: output, shape index: {}]
  %s5 = sld [smem:[#allocation0]]
  $region53: #{tpu_custom_call.1} parent=0
    _
  %s7 = ssub.s32 1, %s5
  %s8 = scalar_select 0, %s7, %s5
  $region1: #{tpu_custom_call.1} parent=0
    #allocation2 [shape = 'u8[65536]{0}', space=vmem, size = 0x10000, scoped, tag = 'input window, operand 0']
    #allocation3 [shape = 's32[2]{0}', space=sflag, size = 0x8, scoped, tag = 'scoped memory for tpu_custom_call.1']
    #allocation4 [shape = 's32[2]{0}', space=sflag, size = 0x8, scoped, tag = 'scoped memory for tpu_custom_call.1']
    #allocation5 [shape = 'u8[65536]{0}', space=vmem, size = 0x10000, scoped, tag = 'output window, operand 0']
    %9 = vsyncpa [#allocation3], 0
    %s10 = scalar_lea.sflag [#allocation3], 1
    %11 = vsyncpa %s10, 0
    %12 = vsyncpa [#allocation4], 0
    %s13 = scalar_lea.sflag [#allocation4], 1
    %14 = vsyncpa %s13, 0
    loop: start=0, step=1, limit=4
    $region2: #{tpu_custom_call.1} parent=1 // loop_pre_header
      _
    $region3: #{tpu_custom_call.1} parent=1 // loop_header
      %s16 = sphi 0, %s20
      %p17 = scmp.ge.s32.totalorder %s16, 4
      %s26 = sphi 0, %s28
      %s29 = sphi 0, %s26
      %s30 = sphi 0, %s29
      %s46 = sphi 0, %s30
      %s50 = sphi 0, %s50
      %s52 = sphi 0, %s50
      %s53 = sphi 0, %s52
      %s67 = sphi 0, %s53
      %s71 = sphi 0, %s71
      %s73 = sphi 0, %s71
      %s74 = sphi 0, %s73
      %s88 = sphi 0, %s74
      %s92 = sphi 0, %s92
      %s94 = sphi 0, %s92
      %s95 = sphi 0, %s94
      %s109 = sphi 0, %s95
      %s115 = sphi 0, %s117
      %s118 = sphi 0, %s115
      %s119 = sphi 0, %s118
      %s135 = sphi 0, %s119
    $region4: #{tpu_custom_call.1} parent=1 // loop_header_branch
      %19 = sbr.rel (%p17) target = $region8
    $region5: #{tpu_custom_call.1} parent=1 // loop_body
      %s21 = ssub.s32 %s16, 1
      %s22 = ssub.s32 %s16, 2
      %s23 = sadd.s32 %s16, 1
      %s24 = ssub.s32 %s16, %s23
      %p25 = scmp.eq.s32.totalorder %s24, 0
      %s27 = sadd.s32 %s26, 1
      %s28 = scalar_select %p25, %s26, %s27
      %p31 = pneg %p25
      %p32 = scmp.eq.s32.totalorder %s16, 1
      %p33 = por %p31, %p32
      %p34 = scmp.ne.s32.totalorder %s26, %s29
      %p35 = scmp.eq.s32.totalorder %s16, 0
      %p36 = por %p34, %p35
      %p37 = scmp.ne.s32.totalorder %s26, %s29
      %p38 = scmp.eq.s32.totalorder %s21, 1
      %p39 = por %p37, %p38
      %p40 = scmp.ne.s32.totalorder %s29, %s30
      %p41 = scmp.eq.s32.totalorder %s21, 0
      %p42 = por %p40, %p41
      %p43 = scmp.ne.s32.totalorder %s29, %s30
      %p44 = scmp.eq.s32.totalorder %s22, 1
      %p45 = por %p43, %p44
      %p47 = scmp.ne.s32.totalorder %s30, %s46
      %p48 = scmp.eq.s32.totalorder %s22, 0
      %p49 = por %p47, %p48
      %s51 = sadd.s32 %s50, 1
      %p54 = scmp.eq.s32.totalorder %s16, 1
      %p55 = scmp.ne.s32.totalorder %s50, %s52
      %p56 = scmp.eq.s32.totalorder %s16, 0
      %p57 = por %p55, %p56
      %p58 = scmp.ne.s32.totalorder %s50, %s52
      %p59 = scmp.eq.s32.totalorder %s21, 1
      %p60 = por %p58, %p59
      %p61 = scmp.ne.s32.totalorder %s52, %s53
      %p62 = scmp.eq.s32.totalorder %s21, 0
      %p63 = por %p61, %p62
      %p64 = scmp.ne.s32.totalorder %s52, %s53
      %p65 = scmp.eq.s32.totalorder %s22, 1
      %p66 = por %p64, %p65
      %p68 = scmp.ne.s32.totalorder %s53, %s67
      %p69 = scmp.eq.s32.totalorder %s22, 0
      %p70 = por %p68, %p69
      %s72 = sadd.s32 %s71, 1
      %p75 = scmp.eq.s32.totalorder %s16, 1
      %p76 = scmp.ne.s32.totalorder %s71, %s73
      %p77 = scmp.eq.s32.totalorder %s16, 0
      %p78 = por %p76, %p77
      %p79 = scmp.ne.s32.totalorder %s71, %s73
      %p80 = scmp.eq.s32.totalorder %s21, 1
      %p81 = por %p79, %p80
      %p82 = scmp.ne.s32.totalorder %s73, %s74
      %p83 = scmp.eq.s32.totalorder %s21, 0
      %p84 = por %p82, %p83
      %p85 = scmp.ne.s32.totalorder %s73, %s74
      %p86 = scmp.eq.s32.totalorder %s22, 1
      %p87 = por %p85, %p86
      %p89 = scmp.ne.s32.totalorder %s74, %s88
      %p90 = scmp.eq.s32.totalorder %s22, 0
      %p91 = por %p89, %p90
      %s93 = sadd.s32 %s92, 1
      %p96 = scmp.eq.s32.totalorder %s16, 1
      %p97 = scmp.ne.s32.totalorder %s92, %s94
      %p98 = scmp.eq.s32.totalorder %s16, 0
      %p99 = por %p97, %p98
      %p100 = scmp.ne.s32.totalorder %s92, %s94
      %p101 = scmp.eq.s32.totalorder %s21, 1
      %p102 = por %p100, %p101
      %p103 = scmp.ne.s32.totalorder %s94, %s95
      %p104 = scmp.eq.s32.totalorder %s21, 0
      %p105 = por %p103, %p104
      %p106 = scmp.ne.s32.totalorder %s94, %s95
      %p107 = scmp.eq.s32.totalorder %s22, 1
      %p108 = por %p106, %p107
      %p110 = scmp.ne.s32.totalorder %s95, %s109
      %p111 = scmp.eq.s32.totalorder %s22, 0
      %p112 = por %p110, %p111
      %s113 = ssub.s32 %s16, %s23
      %p114 = scmp.eq.s32.totalorder %s113, 0
      %s116 = sadd.s32 %s115, 1
      %s117 = scalar_select %p114, %s115, %s116
      %p120 = pneg %p114
      %p121 = scmp.eq.s32.totalorder %s16, 1
      %p122 = por %p120, %p121
      %p123 = scmp.ne.s32.totalorder %s115, %s118
      %p124 = scmp.eq.s32.totalorder %s16, 0
      %p125 = por %p123, %p124
      %p126 = scmp.ne.s32.totalorder %s115, %s118
      %p127 = scmp.eq.s32.totalorder %s21, 1
      %p128 = por %p126, %p127
      %p129 = scmp.ne.s32.totalorder %s118, %s119
      %p130 = scmp.eq.s32.totalorder %s21, 0
      %p131 = por %p129, %p130
      %p132 = scmp.ne.s32.totalorder %s118, %s119
      %p133 = scmp.eq.s32.totalorder %s22, 1
      %p134 = por %p132, %p133
      %p136 = scmp.ne.s32.totalorder %s119, %s135
      %p137 = scmp.eq.s32.totalorder %s22, 0
      %p138 = por %p136, %p137
      %p139 = scmp.le.s32.totalorder 1, %s16
      %p140 = scmp.lt.s32.totalorder %s16, 3
      %p141 = pnand %p139, %p140
      %p142 = pneg %p141
      // Predicated region
      $region9: #{tpu_custom_call.1} parent=5 // pred_check
        _
      $region10: #{tpu_custom_call.1} parent=5 // pred_check_branch
        %144 = sbr.rel (%p141) target = $region12
      $region11: #{tpu_custom_call.1} parent=5 // pred_region
        %s145 = ssub.s32 %s16, 1
        // Predicated region
        $region13: #{tpu_custom_call.1} parent=11 // pred_check
          %p146 = pneg %p63
        $region14: #{tpu_custom_call.1} parent=11 // pred_check_branch
          %148 = sbr.rel (%p146) target = $region16
        $region15: #{tpu_custom_call.1} parent=11 // pred_region
          _
        $region16: #{tpu_custom_call.1} parent=11 // pred_fallthru
          _
        // Predicated region
        $region17: #{tpu_custom_call.1} parent=11 // pred_check
          %p149 = pneg %p84
        $region18: #{tpu_custom_call.1} parent=11 // pred_check_branch
          %151 = sbr.rel (%p149) target = $region20
        $region19: #{tpu_custom_call.1} parent=11 // pred_region
          _
        $region20: #{tpu_custom_call.1} parent=11 // pred_fallthru
          _
        // Predicated region
        $region21: #{tpu_custom_call.1} parent=11 // pred_check
          %p152 = pneg %p105
        $region22: #{tpu_custom_call.1} parent=11 // pred_check_branch
          %154 = sbr.rel (%p152) target = $region24
        $region23: #{tpu_custom_call.1} parent=11 // pred_region
          _
        $region24: #{tpu_custom_call.1} parent=11 // pred_fallthru
          _
      $region12: #{tpu_custom_call.1} parent=5 // pred_fallthru
        _
      %p155 = scmp.lt.s32.totalorder %s16, 2
      // Predicated region
      $region25: #{tpu_custom_call.1} parent=5 // pred_check
        %p156 = pneg %p155
      $region26: #{tpu_custom_call.1} parent=5 // pred_check_branch
        %158 = sbr.rel (%p156) target = $region28
      $region27: #{tpu_custom_call.1} parent=5 // pred_region
        // Predicated region
        $region29: #{tpu_custom_call.1} parent=27 // pred_check
          %p159 = pneg %p36
        $region30: #{tpu_custom_call.1} parent=27 // pred_check_branch
          %161 = sbr.rel (%p159) target = $region32
        $region31: #{tpu_custom_call.1} parent=27 // pred_region
          %s162 = sand.u32 %s26, 1
          %s163 = scalar_lea.sflag [#allocation3], %s162
          %s164 = sand.u32 %s26, 1
          %s165 = smul.addr %s164, 64
          %s166 = scalar_lea.vmem [#allocation2], %s165
          %168 = vsyncadd %s163, 0
          %s169 = smul.addr %s16, 8
          %s170 = smul.addr %s169, 8
          %s171 = scalar_lea.hbm %s0, %s170
          %s172 = sshll.u32 %s171, 4
          %s173 = int_to_ptr.hbm [resolvable:$true] %s172
          %s174 = sshll.u32 %s166, 4
          %s175 = int_to_ptr.vmem [resolvable:$true] %s174
          %180 = dma.hbm_to_vmem [thread:$0]  %s173, 1024, %s175, %s163, 256, 256, 16
        $region32: #{tpu_custom_call.1} parent=27 // pred_fallthru
          _
      $region28: #{tpu_custom_call.1} parent=5 // pred_fallthru
        _
      %p181 = scmp.le.s32.totalorder 1, %s16
      %p182 = scmp.lt.s32.totalorder %s16, 3
      %p183 = pnand %p181, %p182
      %p184 = pneg %p183
      // Predicated region
      $region33: #{tpu_custom_call.1} parent=5 // pred_check
        _
      $region34: #{tpu_custom_call.1} parent=5 // pred_check_branch
        %186 = sbr.rel (%p183) target = $region36
      $region35: #{tpu_custom_call.1} parent=5 // pred_region
        %s187 = ssub.s32 %s16, 1
        %s188 = sand.u32 %s29, 1
        %s189 = scalar_lea.sflag [#allocation3], %s188
        %s190 = sand.u32 %s29, 1
        %s191 = smul.addr %s190, 64
        %s192 = scalar_lea.vmem [#allocation2], %s191
        // Predicated region
        $region37: #{tpu_custom_call.1} parent=35 // pred_check
          %p193 = pneg %p42
        $region38: #{tpu_custom_call.1} parent=35 // pred_check_branch
          %195 = sbr.rel (%p193) target = $region40
        $region39: #{tpu_custom_call.1} parent=35 // pred_region
          %197 = dma.done %s189, 1024
        $region40: #{tpu_custom_call.1} parent=35 // pred_fallthru
          _
        %s198 = sand.u32 %s29, 1
        %s199 = scalar_lea.sflag [#allocation3], %s198
        %s200 = sand.u32 %s29, 1
        %s201 = smul.addr %s200, 64
        %s202 = scalar_lea.vmem [#allocation2], %s201
        %p203 = pneg %p42
        %p204 = pneg %p39
        %p205 = pneg %p63
        %p206 = pneg %p60
        %p207 = pneg %p84
        %p208 = pneg %p81
        %p209 = pneg %p105
        %p210 = pneg %p102
        %p211 = pneg %p131
        %p212 = pneg %p128
        %s213 = sand.u32 %s118, 1
        %s214 = scalar_lea.sflag [#allocation4], %s213
        %s215 = sand.u32 %s118, 1
        %s216 = smul.addr %s215, 64
        %s217 = scalar_lea.vmem [#allocation5], %s216
        %v218 = vld [vmem:[%s192] sm:$0xff]
        %v219 = vld [vmem:[%s192 + $0x8] sm:$0xff]
        %v220 = vld [vmem:[%s192 + $0x10] sm:$0xff]
        %v221 = vld [vmem:[%s192 + $0x18] sm:$0xff]
        %v222 = vld [vmem:[%s192 + $0x20] sm:$0xff]
        %v223 = vld [vmem:[%s192 + $0x28] sm:$0xff]
        %v224 = vld [vmem:[%s192 + $0x30] sm:$0xff]
        %v225 = vld [vmem:[%s192 + $0x38] sm:$0xff]
        %v226 = vadd.f32 %v218, %v219
        %227 = vadd.xlane.f32.xlu0 %v226
        %v228 = vpop.xlane.xlu0 %227
        %v229 = vadd.f32 %v220, %v221
        %230 = vadd.xlane.f32.xlu0 %v229
        %v231 = vpop.xlane.xlu0 %230
        %v232 = vadd.f32 %v222, %v223
        %233 = vadd.xlane.f32.xlu0 %v232
        %v234 = vpop.xlane.xlu0 %233
        %v235 = vadd.f32 %v224, %v225
        %236 = vadd.xlane.f32.xlu0 %v235
        %v237 = vpop.xlane.xlu0 %236
        %v238 = vmul.f32 %v228, 0.00390625
        %v239 = vmul.f32 %v231, 0.00390625
        %v240 = vmul.f32 %v234, 0.00390625
        %v241 = vmul.f32 %v237, 0.00390625
        %v242 = vld [vmem:[%s1] sm:$0xff]
        %v243 = vld [vmem:[%s1 + $0x8] sm:$0xff]
        %v244 = vld [vmem:[%s1 + $0x10] sm:$0xff]
        %v245 = vld [vmem:[%s1 + $0x18] sm:$0xff]
        %v246 = vld [vmem:[%s2] sm:$0x3]
        %v247 = vld [vmem:[%s3] sm:$0x3]
        %v252 = vlaneseq
        %v253 = vand.u32 %v252, 127
        %v254 = vperm.slane %v238, %v253
        %v255 = vadd.s32 %v253, 4294967288
        %v256 = vperm.slane %v239, %v255
        %vm257 = vcmask 130112
        %v258 = vsel %vm257, %v256, %v254
        %v259 = vadd.s32 %v253, 4294967280
        %v260 = vperm.slane %v240, %v259
        %vm261 = vcmask 195712
        %v262 = vsel %vm261, %v260, %v258
        %v263 = vadd.s32 %v253, 4294967272
        %v264 = vperm.slane %v241, %v263
        %vm265 = vcmask 261312
        %v266 = vsel %vm265, %v264, %v262
        %vm267 = vcmask 261120
        %v268 = vsel %vm267, %v266, 0
        %270 = vmatpush.msra.mxu0 0.0
        %271 = vmatpush.msra.mxu0 0.0
        %272 = vmatpush.msra.mxu0 0.0
        %273 = vmatpush.msra.mxu0 0.0
        %274 = vmatpush.msra.mxu0 0.0
        %275 = vmatpush.msra.mxu0 0.0
        %276 = vmatpush.msra.mxu0 0.0
        %277 = vmatpush.msra.mxu0 0.0
        %278 = vmatpush.msra.mxu0 0.0
        %279 = vmatpush.msra.mxu0 0.0
        %280 = vmatpush.msra.mxu0 0.0
        %281 = vmatpush.msra.mxu0 0.0
        %282 = vmatpush.msra.mxu0 %v245
        %283 = vmatpush.msra.mxu0 %v244
        %284 = vmatpush.msra.mxu0 %v243
        %285 = vmatpush.msra.mxu0 %v242
        %286 = vmatmul.f32.gmra.mxu0 %v268
        %v287 = vpop.f32.mrf.mxu0
        %v288 = vadd.f32 0.0, %v287
        %289 = vdwg.mxu0
        %v290 = vmax.f32 %v288, 0.0
        %vm291 = vcmask 15360
        %v293 = vsel %vm291, %v290, 0
        %vm295 = vcmask 1041408
        %v297 = vsel %vm295, %v246, 0
        %299 = vmatpush.msra.mxu0 0.0
        %300 = vmatpush.msra.mxu0 0.0
        %301 = vmatpush.msra.mxu0 0.0
        %302 = vmatpush.msra.mxu0 0.0
        %303 = vmatpush.msra.mxu0 0.0
        %304 = vmatpush.msra.mxu0 0.0
        %305 = vmatpush.msra.mxu0 0.0
        %306 = vmatpush.msra.mxu0 0.0
        %307 = vmatpush.msra.mxu0 0.0
        %308 = vmatpush.msra.mxu0 0.0
        %309 = vmatpush.msra.mxu0 0.0
        %310 = vmatpush.msra.mxu0 0.0
        %311 = vmatpush.msra.mxu0 0.0
        %312 = vmatpush.msra.mxu0 0.0
        %313 = vmatpush.msra.mxu0 0.0
        %314 = vmatpush.msra.mxu0 %v297
        %315 = vmatmul.f32.gmra.mxu0 %v293
        %v316 = vpop.f32.mrf.mxu0
        %v317 = vadd.f32 0.0, %v316
        %318 = vdwg.mxu0
        %v319 = vmax.f32 %v317, 0.0
        %v321 = vsel %vm291, %v319, 0
        %v324 = vsel %vm295, %v247, 0
        %326 = vmatpush.msra.mxu0 0.0
        %327 = vmatpush.msra.mxu0 0.0
        %328 = vmatpush.msra.mxu0 0.0
        %329 = vmatpush.msra.mxu0 0.0
        %330 = vmatpush.msra.mxu0 0.0
        %331 = vmatpush.msra.mxu0 0.0
        %332 = vmatpush.msra.mxu0 0.0
        %333 = vmatpush.msra.mxu0 0.0
        %334 = vmatpush.msra.mxu0 0.0
        %335 = vmatpush.msra.mxu0 0.0
        %336 = vmatpush.msra.mxu0 0.0
        %337 = vmatpush.msra.mxu0 0.0
        %338 = vmatpush.msra.mxu0 0.0
        %339 = vmatpush.msra.mxu0 0.0
        %340 = vmatpush.msra.mxu0 0.0
        %341 = vmatpush.msra.mxu0 %v324
        %342 = vmatmul.f32.gmra.mxu0 %v321
        %v343 = vpop.f32.mrf.mxu0
        %v344 = vadd.f32 0.0, %v343
        %345 = vdwg.mxu0
        %v346 = vxor.u32 %v344, 2147483648
        %v347 = vmul.f32 %v346, 1.442695
        %v348 = vpow.pop %v347
        %v349 = vadd.f32 %v348, 1.0
        %v350 = vrcp.pop %v349
        %v351 = vmul.f32 %v349, %v350
        %v352 = vsub.f32 1.0, %v351
        %v353 = vmul.f32 %v350, %v352
        %v354 = vadd.f32 %v350, %v353
        %vm355 = vweird.f32 %v349
        %vm356 = vweird.f32 %v350
        %vm357 = vmor %vm355, %vm356
        %v358 = vsel %vm357, %v350, %v354
        %v359 = vand.u32 2147483647, %v349
        %vm360 = vcmp.eq.f32.partialorder %v359, 8.507059e+37
        %v361 = vand.u32 %v349, 2147483648
        %v362 = vor.u32 1.1754944e-38, %v361
        %v363 = vsel %vm360, %v362, %v358
        %v364 = vmul.f32 1.0, %v363
        %v365 = vperm.slane %v364, 0
        %v366 = vlaneseq
        %v367 = vshrl.u32 %v366, 7
        %369 = vset.pattern.permute.xlu0 %v367
        %370 = vperm.xlu0 %369, %v365
        %v371 = vpop.permute.xlu0 %370
        %v372 = vlaneseq
        %v373 = vshrl.u32 %v372, 7
        %v374 = vadd.s32 %v373, 8
        %375 = vset.pattern.permute.xlu0 %v374
        %376 = vperm.xlu0 %375, %v365
        %v377 = vpop.permute.xlu0 %376
        %v378 = vlaneseq
        %v379 = vshrl.u32 %v378, 7
        %v380 = vadd.s32 %v379, 16
        %381 = vset.pattern.permute.xlu0 %v380
        %382 = vperm.xlu0 %381, %v365
        %v383 = vpop.permute.xlu0 %382
        %v384 = vlaneseq
        %v385 = vshrl.u32 %v384, 7
        %v386 = vadd.s32 %v385, 24
        %387 = vset.pattern.permute.xlu0 %v386
        %388 = vperm.xlu0 %387, %v365
        %v389 = vpop.permute.xlu0 %388
        %v390 = vmul.f32 %v218, %v371
        %v391 = vmul.f32 %v219, %v371
        %v392 = vmul.f32 %v220, %v377
        %v393 = vmul.f32 %v221, %v377
        %v394 = vmul.f32 %v222, %v383
        %v395 = vmul.f32 %v223, %v383
        %v396 = vmul.f32 %v224, %v389
        %v397 = vmul.f32 %v225, %v389
        %398 = vst [vmem:[%s217] sm:$0xff] %v390
        %399 = vst [vmem:[%s217 + $0x8] sm:$0xff] %v391
        %400 = vst [vmem:[%s217 + $0x10] sm:$0xff] %v392
        %401 = vst [vmem:[%s217 + $0x18] sm:$0xff] %v393
        %402 = vst [vmem:[%s217 + $0x20] sm:$0xff] %v394
        %403 = vst [vmem:[%s217 + $0x28] sm:$0xff] %v395
        %404 = vst [vmem:[%s217 + $0x30] sm:$0xff] %v396
        %405 = vst [vmem:[%s217 + $0x38] sm:$0xff] %v397
        %s406 = sand.u32 %s118, 1
        %s407 = scalar_lea.sflag [#allocation4], %s406
        %s408 = sand.u32 %s118, 1
        %s409 = smul.addr %s408, 64
        %s410 = scalar_lea.vmem [#allocation5], %s409
        // Predicated region
        $region41: #{tpu_custom_call.1} parent=35 // pred_check
          %p411 = pneg %p128
        $region42: #{tpu_custom_call.1} parent=35 // pred_check_branch
          %413 = sbr.rel (%p411) target = $region44
        $region43: #{tpu_custom_call.1} parent=35 // pred_region
          %415 = vsyncadd %s407, 0
          %s416 = smul.addr %s21, 8
          %s417 = smul.addr %s416, 8
          %s418 = scalar_lea.hbm %s4, %s417
          %s419 = sshll.u32 %s410, 4
          %s420 = int_to_ptr.vmem [resolvable:$true] %s419
          %s421 = sshll.u32 %s418, 4
          %s422 = int_to_ptr.hbm [resolvable:$true] %s421
          %427 = dma.vmem_to_hbm [thread:$0]  %s420, 1024, %s422, %s407, 256, 256, 16
        $region44: #{tpu_custom_call.1} parent=35 // pred_fallthru
          _
      $region36: #{tpu_custom_call.1} parent=5 // pred_fallthru
        _
      %p428 = scmp.le.s32.totalorder 2, %s16
      // Predicated region
      $region45: #{tpu_custom_call.1} parent=5 // pred_check
        %p429 = pneg %p428
      $region46: #{tpu_custom_call.1} parent=5 // pred_check_branch
        %431 = sbr.rel (%p429) target = $region48
      $region47: #{tpu_custom_call.1} parent=5 // pred_region
        %s432 = ssub.s32 %s16, 2
        // Predicated region
        $region49: #{tpu_custom_call.1} parent=47 // pred_check
          %p433 = pneg %p134
        $region50: #{tpu_custom_call.1} parent=47 // pred_check_branch
          %435 = sbr.rel (%p433) target = $region52
        $region51: #{tpu_custom_call.1} parent=47 // pred_region
          %s436 = sand.u32 %s119, 1
          %s437 = scalar_lea.sflag [#allocation4], %s436
          %s438 = sand.u32 %s119, 1
          %s439 = smul.addr %s438, 64
          %s440 = scalar_lea.vmem [#allocation5], %s439
          %442 = dma.done %s437, 1024
        $region52: #{tpu_custom_call.1} parent=47 // pred_fallthru
          _
      $region48: #{tpu_custom_call.1} parent=5 // pred_fallthru
        _
    $region6: #{tpu_custom_call.1} parent=1 // loop_footer
      %s20 = sadd.s32 1, %s16
    $region7: #{tpu_custom_call.1} parent=1 // loop_footer_branch
      %15 = sbr.rel target = $region3
    $region8: #{tpu_custom_call.1} parent=1 // loop_exit
      _
    %443 = vsyncpa [#allocation3], 1
    %s444 = scalar_lea.sflag [#allocation3], 1
    %445 = vsyncpa %s444, 1
    %446 = vsyncpa [#allocation4], 1
    %s447 = scalar_lea.sflag [#allocation4], 1
    %448 = vsyncpa %s447, 1

</llo_original>
